<compile_context>
chip_gen: v7x
topology: tpu7x:2x2x1
jax: 0.10.0
libtpu: 0.0.40
codegen_flags: <defaults>
</compile_context>

<pallas_src>
import jax
import jax.numpy as jnp
from jax.experimental import pallas as pl
from jax.experimental.pallas import tpu as pltpu


# ----------------------------------------------------------------------------
# Kernels (memory-bound elementwise multiply by a precomputed 0/1 keep mask)
# ----------------------------------------------------------------------------
def _mask_flat_kernel(keep_ref, x_ref, o_ref):
    # keep_ref: (1, TF)   x_ref / o_ref: (B, TF)   -- lane-dense last dim
    o_ref[...] = x_ref[...] * keep_ref[...]


def _mask_tokens_kernel(keep_ref, x_ref, o_ref):
    # keep_ref: (TN, 1)   x_ref / o_ref: (1, TN, D)   -- fallback layout
    o_ref[...] = x_ref[...] * keep_ref[...][None, :, :]


# ----------------------------------------------------------------------------
# Tile-size helpers (keep per-block footprint ~<= 2 MiB so the double-buffered
# working set fits comfortably even on v7x's 64 MiB VMEM).
# ----------------------------------------------------------------------------
def _pick_flat_tile(nf, b, itemsize, budget_bytes=2 << 20):
    """Largest multiple-of-128 tile dividing nf whose (B, TF) block fits budget."""
    rows = max(8, ((b + 7) // 8) * 8)                      # sublane padding
    tf_cap = max(128, (budget_bytes // (rows * itemsize)) // 128 * 128)
    tf = (min(nf, tf_cap) // 128) * 128
    while tf > 128 and nf % tf != 0:
        tf -= 128
    return max(tf, 128)


def _pick_token_tile(n, d, itemsize, budget_bytes=2 << 20):
    """Largest multiple-of-8 token tile dividing n whose (1, TN, D) block fits."""
    if n % 8 != 0:
        return n                                           # full-extent block is legal
    tn_cap = max(8, (budget_bytes // (max(d, 128) * itemsize)) // 8 * 8)
    tn = (min(n, tn_cap) // 8) * 8
    while tn > 8 and n % tn != 0:
        tn -= 8
    return max(tn, 8)


# ----------------------------------------------------------------------------
# Forward
# ----------------------------------------------------------------------------
def random_mask_forward(x, mask_index):
    """x: (B, N, D) float, mask_index: (N, 1) int32.  Returns (out, mask_index)."""
    B, N, D = x.shape
    itemsize = jnp.dtype(x.dtype).itemsize

    # Hoisted (constant) mask math: keep[i] = 0 if (i == 0 or mask[i] == 1) else 1.
    idx = jnp.arange(N, dtype=jnp.int32)[:, None]                   # (N, 1)
    zero_row = jnp.logical_or(mask_index == 1, idx == 0)            # (N, 1) bool
    keep = jnp.logical_not(zero_row).astype(x.dtype)                # (N, 1) 0/1

    nf = N * D
    if nf % 128 == 0:
        # ---- Lane-dense path: present a (B, N*D) slab, tile the flat axis ----
        tf = _pick_flat_tile(nf, B, itemsize)
        keep_flat = jnp.broadcast_to(keep, (N, D)).reshape(1, nf)   # tiny, constant
        x2 = x.reshape(B, nf)                                       # free view
        out2 = pl.pallas_call(
            _mask_flat_kernel,
            out_shape=jax.ShapeDtypeStruct((B, nf), x.dtype),
            grid_spec=pltpu.PrefetchScalarGridSpec(
                num_scalar_prefetch=0,
                grid=(nf // tf,),
                in_specs=[
                    pl.BlockSpec((1, tf), lambda t: (0, t)),        # keep tile
                    pl.BlockSpec((B, tf), lambda t: (0, t)),        # x tile
                ],
                out_specs=pl.BlockSpec((B, tf), lambda t: (0, t)),
            ),
            compiler_params=pltpu.CompilerParams(
                dimension_semantics=("parallel",)),
        )(keep_flat, x2)
        out = out2.reshape(B, N, D)
    else:
        # ---- Fallback: tile the token axis, keep the full embed dim ----
        tn = _pick_token_tile(N, D, itemsize)
        out = pl.pallas_call(
            _mask_tokens_kernel,
            out_shape=jax.ShapeDtypeStruct((B, N, D), x.dtype),
            grid_spec=pltpu.PrefetchScalarGridSpec(
                num_scalar_prefetch=0,
                grid=(B, N // tn),
                in_specs=[
                    pl.BlockSpec((tn, 1), lambda b, t: (t, 0)),     # keep tile
                    pl.BlockSpec((1, tn, D), lambda b, t: (b, t, 0)),
                ],
                out_specs=pl.BlockSpec((1, tn, D), lambda b, t: (b, t, 0)),
            ),
            compiler_params=pltpu.CompilerParams(
                dimension_semantics=("parallel", "parallel")),
        )(keep, x)

    return out, mask_index


class RandomMask:
    """JAX/Pallas port of the PyTorch RandomMask module."""

    def __init__(self, patchs, embed_dim, key):
        self.patchs = patchs
        self.embed_dim = embed_dim
        # torch.randint(2, (P*P, 1)) equivalent, deterministic via PRNG key.
        self.mask_index = jax.random.randint(
            key, (patchs * patchs, 1), 0, 2, dtype=jnp.int32)

    def __call__(self, x):
        return random_mask_forward(x, self.mask_index)


def _reference(x, mask_index):
    # Pure-JAX reference of the index_fill semantics.
    N = mask_index.shape[0]
    idx = jnp.arange(N)[:, None]
    zero_row = jnp.logical_or(mask_index == 1, idx == 0)            # (N, 1)
    return jnp.where(zero_row[None, :, :], jnp.zeros_like(x), x)


if __name__ == "__main__":
    key = jax.random.PRNGKey(0)
    k_mask, k_x, k_mask2, k_x2 = jax.random.split(key, 4)

    # --- Primary (lane-dense flattened) path: N*D is a multiple of 128 ---
    patchs, embed_dim, batch = 4, 32, 2          # N = 16 tokens, N*D = 512
    module = RandomMask(patchs, embed_dim, k_mask)
    x = jax.random.normal(k_x, (batch, patchs * patchs, embed_dim),
                          dtype=jnp.float32)
    out, mask = module(x)
    out = jax.block_until_ready(out)
    ref = _reference(x, module.mask_index)
    assert out.shape == x.shape
    assert mask.shape == (patchs * patchs, 1)
    assert jnp.allclose(out, ref), "Pallas (flat path) mismatch vs reference"

    # --- Fallback (token-tiled) path: N*D not a multiple of 128 ---
    patchs2, embed_dim2 = 3, 20                  # N = 9 tokens, N*D = 180
    module2 = RandomMask(patchs2, embed_dim2, k_mask2)
    x2 = jax.random.normal(k_x2, (batch, patchs2 * patchs2, embed_dim2),
                           dtype=jnp.float32)
    out2, mask2 = module2(x2)
    out2 = jax.block_until_ready(out2)
    ref2 = _reference(x2, module2.mask_index)
    assert out2.shape == x2.shape
    assert jnp.allclose(out2, ref2), "Pallas (token path) mismatch vs reference"

    print("KERNEL_OK")
</pallas_src>

<mosaic_0001>
module attributes {stable_mosaic.version = 11 : i64} {
  func.func @_mask_flat_kernel(%arg0: i32, %arg1: memref<1x512xf32, #tpu.memory_space<vmem>>, %arg2: memref<2x512xf32, #tpu.memory_space<vmem>>, %arg3: memref<2x512xf32, #tpu.memory_space<vmem>>) attributes {dimension_semantics = [#tpu.dimension_semantics<parallel>], iteration_bounds = array<i64: 1>, scalar_prefetch = 0 : i64, scratch_operands = 0 : i64, tpu.core_type = #tpu.core_type<tc>, window_params = [{transform_indices = @transform_0, window_bounds = array<i64: 1, 512>}, {transform_indices = @transform_1, window_bounds = array<i64: 2, 512>}, {transform_indices = @transform_2, window_bounds = array<i64: 2, 512>}]} {
    %c0 = arith.constant 0 : index
    %c0_0 = arith.constant 0 : index
    %0 = vector.load %arg2[%c0, %c0_0] : memref<2x512xf32, #tpu.memory_space<vmem>>, vector<2x512xf32>
    %c0_1 = arith.constant 0 : index
    %c0_2 = arith.constant 0 : index
    %1 = vector.load %arg1[%c0_1, %c0_2] : memref<1x512xf32, #tpu.memory_space<vmem>>, vector<1x512xf32>
    %2 = vector.broadcast %1 : vector<1x512xf32> to vector<2x512xf32>
    %3 = arith.mulf %0, %2 : vector<2x512xf32>
    %c0_3 = arith.constant 0 : index
    %c0_4 = arith.constant 0 : index
    %4 = vector.load %arg3[%c0_3, %c0_4] : memref<2x512xf32, #tpu.memory_space<vmem>>, vector<2x512xf32>
    tpu.vector_store %arg3[%c0_3, %c0_4], %3 {strides = array<i32>} : memref<2x512xf32, #tpu.memory_space<vmem>>, vector<2x512xf32>,
    return
  }
  func.func @transform_0(%arg0: i32) -> (i32, i32) {
    %c0_i32 = arith.constant 0 : i32
    %c0_i32_0 = arith.constant 0 : i32
    return %c0_i32, %arg0 : i32, i32
  }
  func.func @transform_1(%arg0: i32) -> (i32, i32) {
    %c0_i32 = arith.constant 0 : i32
    %c0_i32_0 = arith.constant 0 : i32
    return %c0_i32, %arg0 : i32, i32
  }
  func.func @transform_2(%arg0: i32) -> (i32, i32) {
    %c0_i32 = arith.constant 0 : i32
    %c0_i32_0 = arith.constant 0 : i32
    return %c0_i32, %arg0 : i32, i32
  }
}

</mosaic_0001>

<llo_original>
// kernel: tpu_custom_call.1
$region0: #{tpu_custom_call.1}
  #allocation0 [shape = 'u32[]', space=smem, size = 0x4, offset = 0x4, fixed_abs, tag = 'smem constant byte address 0x4 - core index']
  #allocation1 [shape = 'u32[144,128]{1,0:T(1,128)}', space=vmem, size = 0x12000, scoped, tag = 'internal scratch']
  %s0 = inlined_call_operand.hbm [shape: f32[1,512], index: 0, kind: input, shape index: {}]
  %s1 = inlined_call_operand.hbm [shape: f32[2,512], index: 1, kind: input, shape index: {}]
  %s2 = inlined_call_operand.hbm [shape: f32[2,512], index: 2, kind: output, shape index: {}]
  %s3 = sld [smem:[#allocation0]]
  $region26: #{tpu_custom_call.1} parent=0
    _
  %s5 = ssub.s32 1, %s3
  %s6 = scalar_select 0, %s5, %s3
  $region1: #{tpu_custom_call.1} parent=0
    #allocation2 [shape = 'u8[2048]{0}', space=vmem, size = 0x800, scoped, tag = 'input window, operand 0, single buffered']
    #allocation3 [shape = 's32[1]{0}', space=sflag, size = 0x4, scoped, tag = 'scoped memory for tpu_custom_call.1']
    #allocation4 [shape = 's32[1]{0}', space=sflag, size = 0x4, scoped, tag = 'scoped memory for tpu_custom_call.1']
    #allocation5 [shape = 'u8[4096]{0}', space=vmem, size = 0x1000, scoped, tag = 'input window, operand 1, single buffered']
    #allocation6 [shape = 's32[1]{0}', space=sflag, size = 0x4, scoped, tag = 'scoped memory for tpu_custom_call.1']
    #allocation7 [shape = 'u8[4096]{0}', space=vmem, size = 0x1000, scoped, tag = 'output window, operand 0, single buffered']
    %7 = vsyncpa [#allocation3], 0
    %8 = vsyncpa [#allocation6], 0
    %9 = vsyncpa [#allocation4], 0
    // Predicated region
    $region2: #{tpu_custom_call.1} parent=1 // pred_check
      _
    $region3: #{tpu_custom_call.1} parent=1 // pred_check_branch
      %11 = sbr.rel (0) target = $region5
    $region4: #{tpu_custom_call.1} parent=1 // pred_region
      %s13 = ssub.s32 64, 64
      %14 = vsyncadd [#allocation3], %s13
      %s16 = sshll.u32 [#allocation2], 4
      %s17 = int_to_ptr.vmem [resolvable:$true] %s16
      %19 = dma.hbm_to_vmem [thread:$0]  %s0, 64, %s17, [#allocation3]
    $region5: #{tpu_custom_call.1} parent=1 // pred_fallthru
      _
    // Predicated region
    $region6: #{tpu_custom_call.1} parent=1 // pred_check
      _
    $region7: #{tpu_custom_call.1} parent=1 // pred_check_branch
      %21 = sbr.rel (0) target = $region9
    $region8: #{tpu_custom_call.1} parent=1 // pred_region
      %s23 = ssub.s32 128, 128
      %24 = vsyncadd [#allocation6], %s23
      %s26 = sshll.u32 [#allocation5], 4
      %s27 = int_to_ptr.vmem [resolvable:$true] %s26
      %29 = dma.hbm_to_vmem [thread:$0]  %s1, 128, %s27, [#allocation6]
    $region9: #{tpu_custom_call.1} parent=1 // pred_fallthru
      _
    // Predicated region
    $region10: #{tpu_custom_call.1} parent=1 // pred_check
      _
    $region11: #{tpu_custom_call.1} parent=1 // pred_check_branch
      %31 = sbr.rel (0) target = $region13
    $region12: #{tpu_custom_call.1} parent=1 // pred_region
      %32 = dma.done [#allocation3], 64
    $region13: #{tpu_custom_call.1} parent=1 // pred_fallthru
      _
    // Predicated region
    $region14: #{tpu_custom_call.1} parent=1 // pred_check
      _
    $region15: #{tpu_custom_call.1} parent=1 // pred_check_branch
      %34 = sbr.rel (0) target = $region17
    $region16: #{tpu_custom_call.1} parent=1 // pred_region
      %35 = dma.done [#allocation6], 128
    $region17: #{tpu_custom_call.1} parent=1 // pred_fallthru
      _
    %v36 = vld [vmem:[#allocation5] sm:$0xff]
    %v37 = vld [vmem:[#allocation2] sm:$0xf]
    %v39 = vlaneseq
    %v40 = vshrl.u32 %v39, 7
    %v41 = vsub.s32 0, %v40
    %v42 = vrot.slane %v37, %v41
    %v43 = vlaneseq
    %v44 = vshrl.u32 %v43, 7
    %v45 = vsub.s32 1, %v44
    %v46 = vrot.slane %v37, %v45
    %v47 = vlaneseq
    %v48 = vshrl.u32 %v47, 7
    %v49 = vsub.s32 2, %v48
    %v50 = vrot.slane %v37, %v49
    %v51 = vlaneseq
    %v52 = vshrl.u32 %v51, 7
    %v53 = vsub.s32 3, %v52
    %v54 = vrot.slane %v37, %v53
    %v55 = vcombine.low %v42, %v46
    %v56 = vcombine.low %v50, %v54
    %v58 = vunpack.c.l.s4 1983009808
    %v59 = vunpack.c.0.s8 %v58
    %v60 = vlaneseq
    %v61 = vshrl.u32 %v60, 7
    %v62 = vsub.s32 %v59, %v61
    %v63 = vrot.slane %v55, %v62
    %v65 = vunpack.c.l.s4 1983009808
    %v66 = vunpack.c.0.s8 %v65
    %v67 = vlaneseq
    %v68 = vshrl.u32 %v67, 7
    %v69 = vsub.s32 %v66, %v68
    %v70 = vrot.slane %v56, %v69
    %v71 = vcombine.low %v63, %v70
    %v73 = vmul.f32 %v36, %v71
    %74 = vst [vmem:[#allocation7] sm:$0xff] %v73
    // Predicated region
    $region18: #{tpu_custom_call.1} parent=1 // pred_check
      _
    $region19: #{tpu_custom_call.1} parent=1 // pred_check_branch
      %76 = sbr.rel (0) target = $region21
    $region20: #{tpu_custom_call.1} parent=1 // pred_region
      %s78 = ssub.s32 128, 128
      %79 = vsyncadd [#allocation4], %s78
      %s81 = sshll.u32 [#allocation7], 4
      %s82 = int_to_ptr.vmem [resolvable:$true] %s81
      %84 = dma.vmem_to_hbm [thread:$0]  %s82, 128, %s2, [#allocation4]
    $region21: #{tpu_custom_call.1} parent=1 // pred_fallthru
      _
    // Predicated region
    $region22: #{tpu_custom_call.1} parent=1 // pred_check
      _
    $region23: #{tpu_custom_call.1} parent=1 // pred_check_branch
      %86 = sbr.rel (0) target = $region25
    $region24: #{tpu_custom_call.1} parent=1 // pred_region
      %87 = dma.done [#allocation4], 128
    $region25: #{tpu_custom_call.1} parent=1 // pred_fallthru
      _
    %88 = vsyncpa [#allocation3], 1
    %89 = vsyncpa [#allocation6], 1
    %90 = vsyncpa [#allocation4], 1

</llo_original>
